<compile_context>
chip_gen: v7x
topology: tpu7x:2x2x1
jax: 0.10.0
libtpu: 0.0.40
codegen_flags: <defaults>
</compile_context>

<pallas_src>
import jax
import jax.numpy as jnp
from jax.experimental import pallas as pl
from jax.experimental.pallas import tpu as pltpu


def feature_kernel(z_ref, w_ref, a_ref, ea_ref, es_ref, o_ref):
    """Fused encoder -> softmax -> kron, feature-major (batch on lanes).

    Per grid step:
      z_ref : (block_b, z_dim)   batch-major block of z
      w_ref : (S, z_dim)         resident encoder weight, 1/tau pre-folded
      a_ref : (block_b, A)       batch-major block of action
      ea_ref: (A*S, A)           resident 0/1 selection (row r picks action r//S)
      es_ref: (A*S, S)           resident 0/1 selection (row r picks state  r%S)
      o_ref : (A*S, block_b)     lane-dense transposed phi block
    """
    # logits^T = W @ z^T  -> (S, block_b). Contraction over the last dim of
    # both operands (== pl.dot(..., trans_b=True)); batch lands on lanes.
    logits = jax.lax.dot_general(
        w_ref[...], z_ref[...],
        dimension_numbers=(((1,), (1,)), ((), ())),
        preferred_element_type=jnp.float32)

    # Numerically-stable softmax over the state axis (sublane axis, S rows).
    m = jnp.max(logits, axis=0, keepdims=True)            # (1, block_b)
    e = jnp.exp(logits - m)                                # (S, block_b)
    denom = jnp.sum(e, axis=0, keepdims=True)              # (1, block_b)
    r = pl.reciprocal(denom, approx=True)                   # EUP
    r = r * (2.0 - denom * r)                                # Newton step -> f32 acc.
    p = e * r                                                # (S, block_b)

    # kron(action, p) transposed: phi^T[a*S+s, b] = act[b, a] * p^T[s, b].
    # (E_A @ act^T) repeats each action row S times; (E_S @ p^T) tiles p A
    # times. Both are tiny constant matmuls on the idle MXU.
    act_rep = jax.lax.dot_general(
        ea_ref[...], a_ref[...],
        dimension_numbers=(((1,), (1,)), ((), ())),
        preferred_element_type=jnp.float32)                  # (A*S, block_b)
    p_tile = jnp.dot(es_ref[...], p,
                     preferred_element_type=jnp.float32)     # (A*S, block_b)

    o_ref[...] = (act_rep * p_tile).astype(o_ref.dtype)


def _round_up(x, m):
    return -(-x // m) * m


def _auto_block_b(batch, max_block_b=8192):
    """Pick a batch tile: lane-dense (mult. of 128), large, >=2 (even) steps."""
    if batch <= 256:
        # Tiny batch: one full-batch block (block == full dim satisfies all
        # (8,128) tiling constraints automatically).
        return batch
    # Even number of grid steps >= 2 so both v7x TensorCores get balanced work.
    n_steps = 2 * (-(-batch // (2 * max_block_b)))
    n_steps = max(2, n_steps)
    blk = _round_up(-(-batch // n_steps), 128)
    return max(128, min(max_block_b, blk))


def feature_forward(z, action, w_enc, *, tau=1.0, block_b=None,
                    transposed_output=False):
    """Pallas Feature.forward.

    z      : (B, z_dim) float32
    action : (B, action_dim) float32
    w_enc  : (state_dim, z_dim) float32  -- nn.Linear(z_dim, state_dim).weight
    Returns phi (B, action_dim*state_dim), or its lane-dense transpose
    (action_dim*state_dim, B) if transposed_output=True.
    """
    B, z_dim = z.shape
    Bb, action_dim = action.shape
    assert B == Bb
    state_dim, z_dim2 = w_enc.shape
    assert z_dim == z_dim2
    out_dim = action_dim * state_dim

    # Fold 1/tau into the tiny resident weight once (O(S*z_dim), done in the
    # wrapper; softmax(x/tau) == softmax((W/tau) z)).
    w_scaled = (w_enc * (1.0 / float(tau))).astype(jnp.float32)

    # Constant 0/1 selection matrices, resident in VMEM across the whole grid.
    rows = jnp.arange(out_dim)
    e_a = (rows[:, None] // state_dim ==
           jnp.arange(action_dim)[None, :]).astype(jnp.float32)   # (A*S, A)
    e_s = (rows[:, None] % state_dim ==
           jnp.arange(state_dim)[None, :]).astype(jnp.float32)    # (A*S, S)

    # Batch tiling: no padding / slicing of batch-sized arrays; the last grid
    # step may be partial (OOB rows compute garbage independently, OOB output
    # lanes are dropped on writeback).
    if block_b is None:
        block_b = _auto_block_b(B)
    elif block_b >= B:
        block_b = B
    else:
        block_b = _round_up(int(block_b), 128)
    grid = (pl.cdiv(B, block_b),)

    vmem = pltpu.MemorySpace.VMEM
    out_t = pl.pallas_call(
        feature_kernel,
        out_shape=jax.ShapeDtypeStruct((out_dim, B), jnp.float32),
        grid=grid,
        in_specs=[
            pl.BlockSpec((block_b, z_dim), lambda i: (i, 0), memory_space=vmem),
            pl.BlockSpec((state_dim, z_dim), lambda i: (0, 0), memory_space=vmem),    # resident
            pl.BlockSpec((block_b, action_dim), lambda i: (i, 0), memory_space=vmem),
            pl.BlockSpec((out_dim, action_dim), lambda i: (0, 0), memory_space=vmem),  # resident
            pl.BlockSpec((out_dim, state_dim), lambda i: (0, 0), memory_space=vmem),   # resident
        ],
        out_specs=pl.BlockSpec((out_dim, block_b), lambda i: (0, i),
                               memory_space=vmem),
        compiler_params=pltpu.CompilerParams(
            dimension_semantics=("parallel",),   # megacore split on v7x
        ),
    )(z, w_scaled, action, e_a, e_s)

    if transposed_output:
        return out_t
    # Module semantics: (B, A*S). Pure layout plumbing; skip via
    # transposed_output=True when downstream can consume phi^T.
    return out_t.T


def _reference(z, action, w_enc, tau):
    logits = z @ w_enc.T
    p = jax.nn.softmax(logits / tau, axis=-1)
    return (action[:, :, None] * p[:, None, :]).reshape(z.shape[0], -1)


if __name__ == "__main__":
    # Small shapes consistent with Feature(z_dim, action_dim, state_dim=3).
    B, z_dim, action_dim, state_dim = 8, 32, 4, 3

    key = jax.random.PRNGKey(0)
    k_w, k_z, k_a = jax.random.split(key, 3)

    # Orthogonal-ish encoder weight, mirroring nn.init.orthogonal_ on
    # nn.Linear(z_dim, state_dim).weight of shape (state_dim, z_dim).
    a = jax.random.normal(k_w, (z_dim, state_dim), jnp.float32)
    q, _ = jnp.linalg.qr(a)
    w_enc = q.T                                          # (state_dim, z_dim)

    z = jax.random.normal(k_z, (B, z_dim), jnp.float32)
    action = jax.random.normal(k_a, (B, action_dim), jnp.float32)

    phi = feature_forward(z, action, w_enc, tau=1.0)
    phi = jax.block_until_ready(phi)
    ref = _reference(z, action, w_enc, 1.0)
    assert phi.shape == (B, action_dim * state_dim)
    err = float(jnp.max(jnp.abs(phi - ref)))
    assert jnp.allclose(phi, ref, atol=1e-4, rtol=1e-4), err

    # Second check: multi-step grid + partial (unpadded) last block + tau != 1.
    B2, tau2 = 300, 0.7
    k_z2, k_a2 = jax.random.split(jax.random.PRNGKey(1), 2)
    z2 = jax.random.normal(k_z2, (B2, z_dim), jnp.float32)
    action2 = jax.random.normal(k_a2, (B2, action_dim), jnp.float32)
    phi2 = feature_forward(z2, action2, w_enc, tau=tau2, block_b=128)
    phi2 = jax.block_until_ready(phi2)
    ref2 = _reference(z2, action2, w_enc, tau2)
    assert phi2.shape == (B2, action_dim * state_dim)
    err2 = float(jnp.max(jnp.abs(phi2 - ref2)))
    assert jnp.allclose(phi2, ref2, atol=1e-4, rtol=1e-4), err2

    print("KERNEL_OK")
</pallas_src>

<mosaic_0001>
module attributes {stable_mosaic.version = 11 : i64} {
  func.func @feature_kernel(%arg0: i32, %arg1: memref<8x32xf32, #tpu.memory_space<vmem>>, %arg2: memref<3x32xf32, #tpu.memory_space<vmem>>, %arg3: memref<8x4xf32, #tpu.memory_space<vmem>>, %arg4: memref<12x4xf32, #tpu.memory_space<vmem>>, %arg5: memref<12x3xf32, #tpu.memory_space<vmem>>, %arg6: memref<12x8xf32, #tpu.memory_space<vmem>>) attributes {dimension_semantics = [#tpu.dimension_semantics<parallel>], iteration_bounds = array<i64: 1>, scalar_prefetch = 0 : i64, scratch_operands = 0 : i64, tpu.core_type = #tpu.core_type<tc>, window_params = [{transform_indices = @transform_0, window_bounds = array<i64: 8, 32>}, {pipeline_mode = #tpu.pipeline_mode<synchronous>, transform_indices = @transform_1, window_bounds = array<i64: 3, 32>}, {transform_indices = @transform_2, window_bounds = array<i64: 8, 4>}, {pipeline_mode = #tpu.pipeline_mode<synchronous>, transform_indices = @transform_3, window_bounds = array<i64: 12, 4>}, {pipeline_mode = #tpu.pipeline_mode<synchronous>, transform_indices = @transform_4, window_bounds = array<i64: 12, 3>}, {transform_indices = @transform_5, window_bounds = array<i64: 12, 8>}]} {
    %c0 = arith.constant 0 : index
    %c0_0 = arith.constant 0 : index
    %0 = vector.load %arg2[%c0, %c0_0] : memref<3x32xf32, #tpu.memory_space<vmem>>, vector<3x32xf32>
    %c0_1 = arith.constant 0 : index
    %c0_2 = arith.constant 0 : index
    %1 = vector.load %arg1[%c0_1, %c0_2] : memref<8x32xf32, #tpu.memory_space<vmem>>, vector<8x32xf32>
    %cst = arith.constant dense<0.000000e+00> : vector<3x8xf32>
    %2 = tpu.matmul %0, %1, %cst {dimension_numbers = #tpu.dot_dimension_numbers<[1], [1], [0], [0], [0, 0, 1, 0], [], []>} : vector<3x32xf32>, vector<8x32xf32>, vector<3x8xf32> -> vector<3x8xf32>
    %cst_3 = arith.constant dense<0xFF800000> : vector<8xf32>
    %3 = vector.multi_reduction <maximumf>, %2, %cst_3 [0] : vector<3x8xf32> to vector<8xf32>
    %4 = vector.shape_cast %3 : vector<8xf32> to vector<1x8xf32>
    %5 = vector.broadcast %4 : vector<1x8xf32> to vector<3x8xf32>
    %6 = arith.subf %2, %5 : vector<3x8xf32>
    %7 = math.exp %6 : vector<3x8xf32>
    %cst_4 = arith.constant dense<0.000000e+00> : vector<8xf32>
    %8 = vector.multi_reduction <add>, %7, %cst_4 [0] : vector<3x8xf32> to vector<8xf32>
    %9 = vector.shape_cast %8 : vector<8xf32> to vector<1x8xf32>
    %10 = tpu.reciprocal %9 {approx = true} : vector<1x8xf32> -> vector<1x8xf32>
    %11 = arith.mulf %9, %10 : vector<1x8xf32>
    %cst_5 = arith.constant 2.000000e+00 : f32
    %12 = vector.broadcast %cst_5 : f32 to vector<1x8xf32>
    %13 = arith.subf %12, %11 : vector<1x8xf32>
    %14 = arith.mulf %10, %13 : vector<1x8xf32>
    %15 = vector.broadcast %14 : vector<1x8xf32> to vector<3x8xf32>
    %16 = arith.mulf %7, %15 : vector<3x8xf32>
    %c0_6 = arith.constant 0 : index
    %c0_7 = arith.constant 0 : index
    %17 = vector.load %arg4[%c0_6, %c0_7] : memref<12x4xf32, #tpu.memory_space<vmem>>, vector<12x4xf32>
    %c0_8 = arith.constant 0 : index
    %c0_9 = arith.constant 0 : index
    %18 = vector.load %arg3[%c0_8, %c0_9] : memref<8x4xf32, #tpu.memory_space<vmem>>, vector<8x4xf32>
    %cst_10 = arith.constant dense<0.000000e+00> : vector<12x8xf32>
    %19 = tpu.matmul %17, %18, %cst_10 {dimension_numbers = #tpu.dot_dimension_numbers<[1], [1], [0], [0], [0, 0, 1, 0], [], []>} : vector<12x4xf32>, vector<8x4xf32>, vector<12x8xf32> -> vector<12x8xf32>
    %c0_11 = arith.constant 0 : index
    %c0_12 = arith.constant 0 : index
    %20 = vector.load %arg5[%c0_11, %c0_12] : memref<12x3xf32, #tpu.memory_space<vmem>>, vector<12x3xf32>
    %cst_13 = arith.constant dense<0.000000e+00> : vector<12x8xf32>
    %21 = tpu.matmul %20, %16, %cst_13 {dimension_numbers = #tpu.dot_dimension_numbers<[1], [0], [0], [1], [0, 0, 1, 1], [], []>} : vector<12x3xf32>, vector<3x8xf32>, vector<12x8xf32> -> vector<12x8xf32>
    %22 = arith.mulf %19, %21 : vector<12x8xf32>
    %c0_14 = arith.constant 0 : index
    %c0_15 = arith.constant 0 : index
    %23 = vector.load %arg6[%c0_14, %c0_15] : memref<12x8xf32, #tpu.memory_space<vmem>>, vector<12x8xf32>
    tpu.vector_store %arg6[%c0_14, %c0_15], %22 {strides = array<i32>} : memref<12x8xf32, #tpu.memory_space<vmem>>, vector<12x8xf32>,
    return
  }
  func.func @transform_0(%arg0: i32) -> (i32, i32) {
    %c0_i32 = arith.constant 0 : i32
    %c0_i32_0 = arith.constant 0 : i32
    return %arg0, %c0_i32 : i32, i32
  }
  func.func @transform_1(%arg0: i32) -> (i32, i32) {
    %c0_i32 = arith.constant 0 : i32
    %c0_i32_0 = arith.constant 0 : i32
    %c0_i32_1 = arith.constant 0 : i32
    return %c0_i32, %c0_i32_0 : i32, i32
  }
  func.func @transform_2(%arg0: i32) -> (i32, i32) {
    %c0_i32 = arith.constant 0 : i32
    %c0_i32_0 = arith.constant 0 : i32
    return %arg0, %c0_i32 : i32, i32
  }
  func.func @transform_3(%arg0: i32) -> (i32, i32) {
    %c0_i32 = arith.constant 0 : i32
    %c0_i32_0 = arith.constant 0 : i32
    %c0_i32_1 = arith.constant 0 : i32
    return %c0_i32, %c0_i32_0 : i32, i32
  }
  func.func @transform_4(%arg0: i32) -> (i32, i32) {
    %c0_i32 = arith.constant 0 : i32
    %c0_i32_0 = arith.constant 0 : i32
    %c0_i32_1 = arith.constant 0 : i32
    return %c0_i32, %c0_i32_0 : i32, i32
  }
  func.func @transform_5(%arg0: i32) -> (i32, i32) {
    %c0_i32 = arith.constant 0 : i32
    %c0_i32_0 = arith.constant 0 : i32
    return %c0_i32, %arg0 : i32, i32
  }
}

</mosaic_0001>

<llo_original>
// kernel: tpu_custom_call.1
$region0: #{tpu_custom_call.1}
  #allocation0 [shape = 'u32[]', space=smem, size = 0x4, offset = 0x4, fixed_abs, tag = 'smem constant byte address 0x4 - core index']
  #allocation1 [shape = 'u32[144,128]{1,0:T(1,128)}', space=vmem, size = 0x12000, scoped, tag = 'internal scratch']
  %s0 = inlined_call_operand.vmem [shape: f32[8,32], index: 0, kind: input, shape index: {}]
  %s1 = inlined_call_operand.vmem [shape: f32[3,32], index: 1, kind: input, shape index: {}]
  %s2 = inlined_call_operand.vmem [shape: f32[8,4], index: 2, kind: input, shape index: {}]
  %s3 = inlined_call_operand.vmem [shape: f32[12,4], index: 3, kind: input, shape index: {}]
  %s4 = inlined_call_operand.vmem [shape: f32[12,3], index: 4, kind: input, shape index: {}]
  %s5 = inlined_call_operand.vmem [shape: f32[12,8], index: 5, kind: output, shape index: {}]
  %s6 = sld [smem:[#allocation0]]
  $region30: #{tpu_custom_call.1} parent=0
    _
  %s8 = ssub.s32 1, %s6
  %s9 = scalar_select 0, %s8, %s6
  // Predicated region
  $region2: #{tpu_custom_call.1} parent=0 // pred_check
    _
  $region3: #{tpu_custom_call.1} parent=0 // pred_check_branch
    %11 = sbr.rel (0) target = $region5
  $region4: #{tpu_custom_call.1} parent=0 // pred_region
    _
  $region5: #{tpu_custom_call.1} parent=0 // pred_fallthru
    _
  // Predicated region
  $region6: #{tpu_custom_call.1} parent=0 // pred_check
    _
  $region7: #{tpu_custom_call.1} parent=0 // pred_check_branch
    %13 = sbr.rel (0) target = $region9
  $region8: #{tpu_custom_call.1} parent=0 // pred_region
    _
  $region9: #{tpu_custom_call.1} parent=0 // pred_fallthru
    _
  // Predicated region
  $region10: #{tpu_custom_call.1} parent=0 // pred_check
    _
  $region11: #{tpu_custom_call.1} parent=0 // pred_check_branch
    %15 = sbr.rel (0) target = $region13
  $region12: #{tpu_custom_call.1} parent=0 // pred_region
    _
  $region13: #{tpu_custom_call.1} parent=0 // pred_fallthru
    _
  // Predicated region
  $region14: #{tpu_custom_call.1} parent=0 // pred_check
    _
  $region15: #{tpu_custom_call.1} parent=0 // pred_check_branch
    %17 = sbr.rel (0) target = $region17
  $region16: #{tpu_custom_call.1} parent=0 // pred_region
    _
  $region17: #{tpu_custom_call.1} parent=0 // pred_fallthru
    _
  // Predicated region
  $region18: #{tpu_custom_call.1} parent=0 // pred_check
    _
  $region19: #{tpu_custom_call.1} parent=0 // pred_check_branch
    %19 = sbr.rel (0) target = $region21
  $region20: #{tpu_custom_call.1} parent=0 // pred_region
    _
  $region21: #{tpu_custom_call.1} parent=0 // pred_fallthru
    _
  %v20 = vld [vmem:[%s1] sm:$0x7]
  %v21 = vld [vmem:[%s0] sm:$0xff]
  %vm22 = vcmask 261120
  %v24 = vsel %vm22, %v20, 0
  %v27 = vsel %vm22, %v21, 0
  %29 = vmatprep.subr.mxu0 0.0
  %30 = vmatpush1.xpose.msra.mxu0 %v27
  %31 = vmatprep.subr.mxu0 0.0
  %32 = vmatpush1.xpose.msra.mxu0 0.0
  %33 = vmatprep.subr.mxu0 0.0
  %34 = vmatpush1.xpose.msra.mxu0 0.0
  %35 = vmatprep.subr.mxu0 0.0
  %36 = vmatpush1.xpose.msra.mxu0 0.0
  %37 = vmatprep.subr.mxu0 0.0
  %38 = vmatpush1.xpose.msra.mxu0 0.0
  %39 = vmatprep.subr.mxu0 0.0
  %40 = vmatpush1.xpose.msra.mxu0 0.0
  %41 = vmatprep.subr.mxu0 0.0
  %42 = vmatpush1.xpose.msra.mxu0 0.0
  %43 = vmatprep.subr.mxu0 0.0
  %44 = vmatpush1.xpose.msra.mxu0 0.0
  %45 = vmatprep.subr.mxu0 0.0
  %46 = vmatpush1.xpose.msra.mxu0 0.0
  %47 = vmatprep.subr.mxu0 0.0
  %48 = vmatpush1.xpose.msra.mxu0 0.0
  %49 = vmatprep.subr.mxu0 0.0
  %50 = vmatpush1.xpose.msra.mxu0 0.0
  %51 = vmatprep.subr.mxu0 0.0
  %52 = vmatpush1.xpose.msra.mxu0 0.0
  %53 = vmatprep.subr.mxu0 0.0
  %54 = vmatpush1.xpose.msra.mxu0 0.0
  %55 = vmatprep.subr.mxu0 0.0
  %56 = vmatpush1.xpose.msra.mxu0 0.0
  %57 = vmatprep.subr.mxu0 0.0
  %58 = vmatpush1.xpose.msra.mxu0 0.0
  %59 = vmatprep.subr.mxu0 0.0
  %60 = vmatpush1.xpose.msra.mxu0 0.0
  %61 = vmatprep.subr.mxu0 0.0
  %62 = vmatpush1.xpose.msra.mxu0 0.0
  %63 = vmatprep.subr.mxu0 0.0
  %64 = vmatpush1.xpose.msra.mxu0 0.0
  %65 = vmatprep.subr.mxu0 0.0
  %66 = vmatpush1.xpose.msra.mxu0 0.0
  %67 = vmatprep.subr.mxu0 0.0
  %68 = vmatpush1.xpose.msra.mxu0 0.0
  %69 = vmatprep.subr.mxu0 0.0
  %70 = vmatpush1.xpose.msra.mxu0 0.0
  %71 = vmatprep.subr.mxu0 0.0
  %72 = vmatpush1.xpose.msra.mxu0 0.0
  %73 = vmatprep.subr.mxu0 0.0
  %74 = vmatpush1.xpose.msra.mxu0 0.0
  %75 = vmatprep.subr.mxu0 0.0
  %76 = vmatpush1.xpose.msra.mxu0 0.0
  %77 = vmatprep.subr.mxu0 0.0
  %78 = vmatpush1.xpose.msra.mxu0 0.0
  %79 = vmatprep.subr.mxu0 0.0
  %80 = vmatpush1.xpose.msra.mxu0 0.0
  %81 = vmatprep.subr.mxu0 0.0
  %82 = vmatpush1.xpose.msra.mxu0 0.0
  %83 = vmatprep.subr.mxu0 0.0
  %84 = vmatpush1.xpose.msra.mxu0 0.0
  %85 = vmatprep.subr.mxu0 0.0
  %86 = vmatpush1.xpose.msra.mxu0 0.0
  %87 = vmatprep.subr.mxu0 0.0
  %88 = vmatpush1.xpose.msra.mxu0 0.0
  %89 = vmatprep.subr.mxu0 0.0
  %90 = vmatpush1.xpose.msra.mxu0 0.0
  %91 = vmatprep.subr.mxu0 0.0
  %92 = vmatpush1.xpose.msra.mxu0 0.0
  %93 = vmatprep.mubr.f32.mxu0 0.0
  %94 = vmatmul.mubr.f32.gmra.mrb[0].mxu0 %v24
  %v95 = vpop.f32.mrb[0].mxu0
  %v96 = vadd.f32 0.0, %v95
  %v97 = vpop.f32.mrb[0].mxu0
  %98 = vdwg.mxu0
  %vm99 = vcmask 59392
  %v100 = vsel %vm99, %v96, -inf
  %v101 = vrot.slane %v100, 4
  %v102 = vmax.f32 %v100, %v101
  %v103 = vrot.slane %v102, 2
  %v104 = vmax.f32 %v102, %v103
  %v105 = vrot.slane %v104, 1
  %v106 = vmax.f32 %v104, %v105
  %v107 = vsub.f32 %v96, %v106
  %v108 = vmul.f32 %v107, 1.442695
  %v109 = vpow.pop %v108
  %v110 = vsel %vm99, %v109, 0.0
  %v111 = vrot.slane %v110, 4
  %v112 = vadd.f32 %v110, %v111
  %v113 = vrot.slane %v112, 2
  %v114 = vadd.f32 %v112, %v113
  %v115 = vrot.slane %v114, 1
  %v116 = vadd.f32 %v114, %v115
  %v117 = vrcp.pop %v116
  %v118 = vmul.f32 %v116, %v117
  %v119 = vsub.f32 2.0, %v118
  %v120 = vmul.f32 %v117, %v119
  %v121 = vmul.f32 %v109, %v120
  %v122 = vld [vmem:[%s3] sm:$0xff]
  %v123 = vld [vmem:[%s3 + $0x8] sm:$0xf]
  %v124 = vld [vmem:[%s2] sm:$0xff]
  %vm125 = vcmask 31744
  %v127 = vsel %vm125, %v122, 0
  %v130 = vsel %vm125, %v123, 0
  %v133 = vsel %vm125, %v124, 0
  %135 = vmatprep.subr.mxu0 0.0
  %136 = vmatpush1.xpose.msra.mxu0 %v133
  %137 = vmatprep.subr.mxu0 0.0
  %138 = vmatpush1.xpose.msra.mxu0 0.0
  %139 = vmatprep.subr.mxu0 0.0
  %140 = vmatpush1.xpose.msra.mxu0 0.0
  %141 = vmatprep.subr.mxu0 0.0
  %142 = vmatpush1.xpose.msra.mxu0 0.0
  %143 = vmatprep.subr.mxu0 0.0
  %144 = vmatpush1.xpose.msra.mxu0 0.0
  %145 = vmatprep.subr.mxu0 0.0
  %146 = vmatpush1.xpose.msra.mxu0 0.0
  %147 = vmatprep.subr.mxu0 0.0
  %148 = vmatpush1.xpose.msra.mxu0 0.0
  %149 = vmatprep.subr.mxu0 0.0
  %150 = vmatpush1.xpose.msra.mxu0 0.0
  %151 = vmatprep.subr.mxu0 0.0
  %152 = vmatpush1.xpose.msra.mxu0 0.0
  %153 = vmatprep.subr.mxu0 0.0
  %154 = vmatpush1.xpose.msra.mxu0 0.0
  %155 = vmatprep.subr.mxu0 0.0
  %156 = vmatpush1.xpose.msra.mxu0 0.0
  %157 = vmatprep.subr.mxu0 0.0
  %158 = vmatpush1.xpose.msra.mxu0 0.0
  %159 = vmatprep.subr.mxu0 0.0
  %160 = vmatpush1.xpose.msra.mxu0 0.0
  %161 = vmatprep.subr.mxu0 0.0
  %162 = vmatpush1.xpose.msra.mxu0 0.0
  %163 = vmatprep.subr.mxu0 0.0
  %164 = vmatpush1.xpose.msra.mxu0 0.0
  %165 = vmatprep.subr.mxu0 0.0
  %166 = vmatpush1.xpose.msra.mxu0 0.0
  %167 = vmatprep.subr.mxu0 0.0
  %168 = vmatpush1.xpose.msra.mxu0 0.0
  %169 = vmatprep.subr.mxu0 0.0
  %170 = vmatpush1.xpose.msra.mxu0 0.0
  %171 = vmatprep.subr.mxu0 0.0
  %172 = vmatpush1.xpose.msra.mxu0 0.0
  %173 = vmatprep.subr.mxu0 0.0
  %174 = vmatpush1.xpose.msra.mxu0 0.0
  %175 = vmatprep.subr.mxu0 0.0
  %176 = vmatpush1.xpose.msra.mxu0 0.0
  %177 = vmatprep.subr.mxu0 0.0
  %178 = vmatpush1.xpose.msra.mxu0 0.0
  %179 = vmatprep.subr.mxu0 0.0
  %180 = vmatpush1.xpose.msra.mxu0 0.0
  %181 = vmatprep.subr.mxu0 0.0
  %182 = vmatpush1.xpose.msra.mxu0 0.0
  %183 = vmatprep.subr.mxu0 0.0
  %184 = vmatpush1.xpose.msra.mxu0 0.0
  %185 = vmatprep.subr.mxu0 0.0
  %186 = vmatpush1.xpose.msra.mxu0 0.0
  %187 = vmatprep.subr.mxu0 0.0
  %188 = vmatpush1.xpose.msra.mxu0 0.0
  %189 = vmatprep.subr.mxu0 0.0
  %190 = vmatpush1.xpose.msra.mxu0 0.0
  %191 = vmatprep.subr.mxu0 0.0
  %192 = vmatpush1.xpose.msra.mxu0 0.0
  %193 = vmatprep.subr.mxu0 0.0
  %194 = vmatpush1.xpose.msra.mxu0 0.0
  %195 = vmatprep.subr.mxu0 0.0
  %196 = vmatpush1.xpose.msra.mxu0 0.0
  %197 = vmatprep.subr.mxu0 0.0
  %198 = vmatpush1.xpose.msra.mxu0 0.0
  %199 = vmatprep.mubr.f32.mxu0 0.0
  %200 = vmatmul.mubr.f32.gmra.mrb[0].mxu0 %v127
  %v201 = vpop.f32.mrb[0].mxu0
  %v202 = vadd.f32 0.0, %v201
  %v203 = vpop.f32.mrb[0].mxu0
  %204 = vmatprep.mubr.f32.mxu0 0.0
  %205 = vmatmul.mubr.f32.gmra.mrb[0].mxu0 %v130
  %v206 = vpop.f32.mrb[0].mxu0
  %v207 = vadd.f32 0.0, %v206
  %v208 = vpop.f32.mrb[0].mxu0
  %209 = vdwg.mxu0
  %v210 = vld [vmem:[%s4] sm:$0xff]
  %v211 = vld [vmem:[%s4 + $0x8] sm:$0xf]
  %vm212 = vcmask 23552
  %v214 = vsel %vm212, %v210, 0
  %v217 = vsel %vm212, %v211, 0
  %vm219 = vcmask 1042432
  %v221 = vsel %vm219, %v121, 0
  %223 = vmatprep.subr.mxu0 0.0
  %224 = vmatpush1.msra.mxu0 %v221
  %225 = vmatprep.subr.mxu0 0.0
  %226 = vmatpush1.msra.mxu0 0.0
  %227 = vmatprep.subr.mxu0 0.0
  %228 = vmatpush1.msra.mxu0 0.0
  %229 = vmatprep.subr.mxu0 0.0
  %230 = vmatpush1.msra.mxu0 0.0
  %231 = vmatprep.subr.mxu0 0.0
  %232 = vmatpush1.msra.mxu0 0.0
  %233 = vmatprep.subr.mxu0 0.0
  %234 = vmatpush1.msra.mxu0 0.0
  %235 = vmatprep.subr.mxu0 0.0
  %236 = vmatpush1.msra.mxu0 0.0
  %237 = vmatprep.subr.mxu0 0.0
  %238 = vmatpush1.msra.mxu0 0.0
  %239 = vmatprep.subr.mxu0 0.0
  %240 = vmatpush1.msra.mxu0 0.0
  %241 = vmatprep.subr.mxu0 0.0
  %242 = vmatpush1.msra.mxu0 0.0
  %243 = vmatprep.subr.mxu0 0.0
  %244 = vmatpush1.msra.mxu0 0.0
  %245 = vmatprep.subr.mxu0 0.0
  %246 = vmatpush1.msra.mxu0 0.0
  %247 = vmatprep.subr.mxu0 0.0
  %248 = vmatpush1.msra.mxu0 0.0
  %249 = vmatprep.subr.mxu0 0.0
  %250 = vmatpush1.msra.mxu0 0.0
  %251 = vmatprep.subr.mxu0 0.0
  %252 = vmatpush1.msra.mxu0 0.0
  %253 = vmatprep.subr.mxu0 0.0
  %254 = vmatpush1.msra.mxu0 0.0
  %255 = vmatprep.subr.mxu0 0.0
  %256 = vmatpush1.msra.mxu0 0.0
  %257 = vmatprep.subr.mxu0 0.0
  %258 = vmatpush1.msra.mxu0 0.0
  %259 = vmatprep.subr.mxu0 0.0
  %260 = vmatpush1.msra.mxu0 0.0
  %261 = vmatprep.subr.mxu0 0.0
  %262 = vmatpush1.msra.mxu0 0.0
  %263 = vmatprep.subr.mxu0 0.0
  %264 = vmatpush1.msra.mxu0 0.0
  %265 = vmatprep.subr.mxu0 0.0
  %266 = vmatpush1.msra.mxu0 0.0
  %267 = vmatprep.subr.mxu0 0.0
  %268 = vmatpush1.msra.mxu0 0.0
  %269 = vmatprep.subr.mxu0 0.0
  %270 = vmatpush1.msra.mxu0 0.0
  %271 = vmatprep.subr.mxu0 0.0
  %272 = vmatpush1.msra.mxu0 0.0
  %273 = vmatprep.subr.mxu0 0.0
  %274 = vmatpush1.msra.mxu0 0.0
  %275 = vmatprep.subr.mxu0 0.0
  %276 = vmatpush1.msra.mxu0 0.0
  %277 = vmatprep.subr.mxu0 0.0
  %278 = vmatpush1.msra.mxu0 0.0
  %279 = vmatprep.subr.mxu0 0.0
  %280 = vmatpush1.msra.mxu0 0.0
  %281 = vmatprep.subr.mxu0 0.0
  %282 = vmatpush1.msra.mxu0 0.0
  %283 = vmatprep.subr.mxu0 0.0
  %284 = vmatpush1.msra.mxu0 0.0
  %285 = vmatprep.subr.mxu0 0.0
  %286 = vmatpush1.msra.mxu0 0.0
  %287 = vmatprep.mubr.f32.mxu0 0.0
  %288 = vmatmul.mubr.f32.gmra.mrb[0].mxu0 %v214
  %v289 = vpop.f32.mrb[0].mxu0
  %v290 = vadd.f32 0.0, %v289
  %v291 = vpop.f32.mrb[0].mxu0
  %292 = vmatprep.mubr.f32.mxu0 0.0
  %293 = vmatmul.mubr.f32.gmra.mrb[0].mxu0 %v217
  %v294 = vpop.f32.mrb[0].mxu0
  %v295 = vadd.f32 0.0, %v294
  %v296 = vpop.f32.mrb[0].mxu0
  %297 = vdwg.mxu0
  %v298 = vmul.f32 %v202, %v290
  %v299 = vmul.f32 %v207, %v295
  %vm300 = vcmask 64512
  %301 = vst.msk [vmem:[%s5] sm:$0xff] %vm300, %v298
  %vm302 = vcmask 60416
  %303 = vst.msk [vmem:[%s5 + $0x8] sm:$0xf] %vm302, %v299
  // Predicated region
  $region22: #{tpu_custom_call.1} parent=0 // pred_check
    _
  $region23: #{tpu_custom_call.1} parent=0 // pred_check_branch
    %305 = sbr.rel (0) target = $region25
  $region24: #{tpu_custom_call.1} parent=0 // pred_region
    _
  $region25: #{tpu_custom_call.1} parent=0 // pred_fallthru
    _
  // Predicated region
  $region26: #{tpu_custom_call.1} parent=0 // pred_check
    _
  $region27: #{tpu_custom_call.1} parent=0 // pred_check_branch
    %307 = sbr.rel (0) target = $region29
  $region28: #{tpu_custom_call.1} parent=0 // pred_region
    _
  $region29: #{tpu_custom_call.1} parent=0 // pred_fallthru
    _

</llo_original>
